<compile_context>
chip_gen: v5e
topology: v5e:2x2
jax: 0.10.0
libtpu: 0.0.40
codegen_flags: <defaults>
</compile_context>

<pallas_src>
import jax
import jax.numpy as jnp
from jax.experimental import pallas as pl
from jax.experimental.pallas import tpu as pltpu

_LANE = 128


def _channel_shuffle_copy_kernel(x_ref, o_ref):
    # Pure copy: the channel permutation is entirely encoded in the BlockSpec
    # index_maps (input block (n, g, :) -> output block (n, :, g)).
    o_ref[...] = x_ref[...]


def channel_shuffle(x, groups, *, max_rows_per_tile=256):
    """Channel shuffle: [N,C,H,W] -> [N,g,C/g,H,W] -> [N,C/g,g,H,W] -> [N,C,H,W]."""
    N, C, H, W = x.shape
    assert C % groups == 0, "C must be divisible by groups"
    cpg = C // groups
    hw = H * W

    # Lane-dense layout: flatten H*W, pad to a multiple of 128 lanes, and view
    # it as (rows, 128) so sublanes are filled and stores are unmasked.
    hw_rows = int(pl.cdiv(hw, _LANE))
    if hw_rows <= max_rows_per_tile:
        tr = hw_rows                     # single HW tile: block == full extent
        n_hw_tiles = 1
    else:
        tr = int(max_rows_per_tile)      # multiple of 8 -> legal sublane tile
        n_hw_tiles = int(pl.cdiv(hw_rows, tr))
    rows_total = tr * n_hw_tiles
    hw_pad = rows_total * _LANE

    x_flat = x.reshape(N, C, hw)
    if hw_pad != hw:
        x_flat = jnp.pad(x_flat, ((0, 0), (0, 0), (0, hw_pad - hw)))

    # Input viewed as (N, g, C/g, rows, 128); output as (N, C/g, g, rows, 128).
    x_r = x_flat.reshape(N, groups, cpg, rows_total, _LANE)

    out_r = pl.pallas_call(
        _channel_shuffle_copy_kernel,
        out_shape=jax.ShapeDtypeStruct(
            (N, cpg, groups, rows_total, _LANE), x.dtype
        ),
        grid=(N, groups, n_hw_tiles),
        in_specs=[
            pl.BlockSpec(
                (None, None, cpg, tr, _LANE),
                lambda n, g, t: (n, g, 0, t, 0),
            )
        ],
        out_specs=pl.BlockSpec(
            (None, cpg, None, tr, _LANE),
            lambda n, g, t: (n, 0, g, t, 0),
        ),
        compiler_params=pltpu.CompilerParams(
            dimension_semantics=("parallel", "parallel", "parallel"),
        ),
    )(x_r)

    # (N, C/g, g, rows, 128) collapses to (N, C, hw_pad) with out channel
    # c = j*g + i, which is exactly the shuffled channel order.
    out_flat = out_r.reshape(N, C, hw_pad)
    if hw_pad != hw:
        out_flat = out_flat[:, :, :hw]
    return out_flat.reshape(N, C, H, W)


def _reference_channel_shuffle(x, groups):
    N, C, H, W = x.shape
    return (
        x.reshape(N, groups, C // groups, H, W)
        .transpose(0, 2, 1, 3, 4)
        .reshape(N, C, H, W)
    )


if __name__ == "__main__":
    key = jax.random.PRNGKey(0)

    # Primary case (matches the module spec scale): N=2, C=4, H=W=16, groups=2.
    N, C, H, W = 2, 4, 16, 16
    groups = 2
    x = jax.random.normal(key, (N, C, H, W), dtype=jnp.float32)

    out = jax.block_until_ready(channel_shuffle(x, groups))
    ref = _reference_channel_shuffle(x, groups)
    assert out.shape == (N, C, H, W)
    assert out.dtype == x.dtype
    assert jnp.allclose(out, ref), "mismatch vs reference channel shuffle"

    # Secondary case: spatial size not a multiple of 128 (exercises lane padding).
    x2 = jax.random.normal(jax.random.PRNGKey(1), (2, 6, 7, 7), dtype=jnp.float32)
    out2 = jax.block_until_ready(channel_shuffle(x2, 3))
    ref2 = _reference_channel_shuffle(x2, 3)
    assert jnp.allclose(out2, ref2), "mismatch vs reference (padded case)"

    print("KERNEL_OK")
</pallas_src>

<mosaic_0001>
module attributes {stable_mosaic.version = 11 : i64} {
  func.func @_channel_shuffle_copy_kernel(%arg0: i32, %arg1: i32, %arg2: i32, %arg3: memref<1x1x2x2x128xf32, #tpu.memory_space<vmem>>, %arg4: memref<1x2x1x2x128xf32, #tpu.memory_space<vmem>>) attributes {dimension_semantics = [#tpu.dimension_semantics<parallel>, #tpu.dimension_semantics<parallel>, #tpu.dimension_semantics<parallel>], iteration_bounds = array<i64: 2, 2, 1>, scalar_prefetch = 0 : i64, scratch_operands = 0 : i64, tpu.core_type = #tpu.core_type<tc>, window_params = [{transform_indices = @transform_0, window_bounds = array<i64: 1, 1, 2, 2, 128>}, {transform_indices = @transform_1, window_bounds = array<i64: 1, 2, 1, 2, 128>}]} {
    %c0 = arith.constant 0 : index
    %c0_0 = arith.constant 0 : index
    %c0_1 = arith.constant 0 : index
    %c0_2 = arith.constant 0 : index
    %c0_3 = arith.constant 0 : index
    %0 = vector.load %arg3[%c0, %c0_0, %c0_1, %c0_2, %c0_3] : memref<1x1x2x2x128xf32, #tpu.memory_space<vmem>>, vector<1x1x2x2x128xf32>
    %1 = vector.shape_cast %0 : vector<1x1x2x2x128xf32> to vector<2x2x128xf32>
    %c0_4 = arith.constant 0 : index
    %c0_5 = arith.constant 0 : index
    %c0_6 = arith.constant 0 : index
    %c0_7 = arith.constant 0 : index
    %c0_8 = arith.constant 0 : index
    %2 = vector.load %arg4[%c0_4, %c0_5, %c0_6, %c0_7, %c0_8] : memref<1x2x1x2x128xf32, #tpu.memory_space<vmem>>, vector<1x2x1x2x128xf32>
    %3 = vector.shape_cast %2 : vector<1x2x1x2x128xf32> to vector<2x2x128xf32>
    %4 = vector.shape_cast %1 : vector<2x2x128xf32> to vector<1x2x1x2x128xf32>
    tpu.vector_store %arg4[%c0_4, %c0_5, %c0_6, %c0_7, %c0_8], %4 {strides = array<i32>} : memref<1x2x1x2x128xf32, #tpu.memory_space<vmem>>, vector<1x2x1x2x128xf32>,
    return
  }
  func.func @transform_0(%arg0: i32, %arg1: i32, %arg2: i32) -> (i32, i32, i32, i32, i32) {
    %c0_i32 = arith.constant 0 : i32
    %c0_i32_0 = arith.constant 0 : i32
    %c0_i32_1 = arith.constant 0 : i32
    return %arg0, %arg1, %c0_i32, %arg2, %c0_i32_0 : i32, i32, i32, i32, i32
  }
  func.func @transform_1(%arg0: i32, %arg1: i32, %arg2: i32) -> (i32, i32, i32, i32, i32) {
    %c0_i32 = arith.constant 0 : i32
    %c0_i32_0 = arith.constant 0 : i32
    %c0_i32_1 = arith.constant 0 : i32
    return %arg0, %c0_i32, %arg1, %arg2, %c0_i32_0 : i32, i32, i32, i32, i32
  }
}

</mosaic_0001>

<llo_original>
// kernel: tpu_custom_call.1
$region0: #{tpu_custom_call.1}
  #allocation0 [shape = 'u32[]', space=smem, size = 0x4, offset = 0x4, fixed_abs, tag = 'smem constant byte address 0x4 - core index']
  #allocation1 [shape = 'u32[72,128]{1,0:T(1,128)}', space=vmem, size = 0x9000, scoped, tag = 'internal scratch']
  %s0 = inlined_call_operand.hbm [shape: f32[2,2,2,2,128], index: 0, kind: input, shape index: {}]
  %s1 = inlined_call_operand.hbm [shape: f32[2,2,2,2,128], index: 1, kind: output, shape index: {}]
  %s2 = sld [smem:[#allocation0]]
  $region41: #{tpu_custom_call.1} parent=0
    _
  %s4 = ssub.s32 1, %s2
  %s5 = scalar_select 0, %s4, %s2
  $region1: #{tpu_custom_call.1} parent=0
    #allocation2 [shape = 'u8[4096]{0}', space=vmem, size = 0x1000, scoped, tag = 'input window, operand 0']
    #allocation3 [shape = 's32[2]{0}', space=sflag, size = 0x8, scoped, tag = 'scoped memory for tpu_custom_call.1']
    #allocation4 [shape = 's32[2]{0}', space=sflag, size = 0x8, scoped, tag = 'scoped memory for tpu_custom_call.1']
    #allocation5 [shape = 'u8[4096]{0}', space=vmem, size = 0x1000, scoped, tag = 'output window, operand 0']
    %6 = vsyncpa [#allocation3], 0
    %s7 = scalar_lea.sflag [#allocation3], 1
    %8 = vsyncpa %s7, 0
    %9 = vsyncpa [#allocation4], 0
    %s10 = scalar_lea.sflag [#allocation4], 1
    %11 = vsyncpa %s10, 0
    loop: start=0, step=1, limit=6
    $region2: #{tpu_custom_call.1} parent=1 // loop_pre_header
      _
    $region3: #{tpu_custom_call.1} parent=1 // loop_header
      %s13 = sphi 0, %s17
      %p14 = scmp.ge.s32.totalorder %s13, 6
      %s20 = sphi 0, %s39
      %s21 = sphi 0, %s35
      %s22 = sphi 0, %s31
      %s23 = sphi 0, %s20
      %s24 = sphi 0, %s21
      %s25 = sphi 0, %s22
      %s26 = sphi 0, %s23
      %s27 = sphi 0, %s24
      %s28 = sphi 0, %s25
      %s46 = sphi 0, %s48
      %s49 = sphi 0, %s46
      %s50 = sphi 0, %s49
      %s66 = sphi 0, %s50
      %s76 = sphi 0, %s78
      %s79 = sphi 0, %s76
      %s80 = sphi 0, %s79
      %s96 = sphi 0, %s80
    $region4: #{tpu_custom_call.1} parent=1 // loop_header_branch
      %16 = sbr.rel (%p14) target = $region8
    $region5: #{tpu_custom_call.1} parent=1 // loop_body
      %s18 = ssub.s32 %s13, 1
      %s19 = ssub.s32 %s13, 2
      %s29 = sadd.s32 1, %s22
      %p30 = scmp.ge.s32.totalorder %s29, 1
      %s31 = scalar_select %p30, 0, %s29
      %s32 = sadd.s32 1, %s21
      %s33 = scalar_select %p30, %s32, %s21
      %p34 = scmp.ge.s32.totalorder %s33, 2
      %s35 = scalar_select %p34, 0, %s33
      %s36 = sadd.s32 1, %s20
      %s37 = scalar_select %p34, %s36, %s20
      %p38 = scmp.ge.s32.totalorder %s37, 2
      %s39 = scalar_select %p38, 0, %s37
      %s40 = ssub.s32 %s20, %s39
      %s41 = ssub.s32 %s21, %s35
      %s42 = sor.u32 %s40, %s41
      %s43 = ssub.s32 %s22, %s31
      %s44 = sor.u32 %s42, %s43
      %p45 = scmp.eq.s32.totalorder %s44, 0
      %s47 = sadd.s32 %s46, 1
      %s48 = scalar_select %p45, %s46, %s47
      %p51 = pneg %p45
      %p52 = scmp.eq.s32.totalorder %s13, 3
      %p53 = por %p51, %p52
      %p54 = scmp.ne.s32.totalorder %s46, %s49
      %p55 = scmp.eq.s32.totalorder %s13, 0
      %p56 = por %p54, %p55
      %p57 = scmp.ne.s32.totalorder %s46, %s49
      %p58 = scmp.eq.s32.totalorder %s18, 3
      %p59 = por %p57, %p58
      %p60 = scmp.ne.s32.totalorder %s49, %s50
      %p61 = scmp.eq.s32.totalorder %s18, 0
      %p62 = por %p60, %p61
      %p63 = scmp.ne.s32.totalorder %s49, %s50
      %p64 = scmp.eq.s32.totalorder %s19, 3
      %p65 = por %p63, %p64
      %p67 = scmp.ne.s32.totalorder %s50, %s66
      %p68 = scmp.eq.s32.totalorder %s19, 0
      %p69 = por %p67, %p68
      %s70 = ssub.s32 %s20, %s39
      %s71 = ssub.s32 %s21, %s35
      %s72 = sor.u32 %s70, %s71
      %s73 = ssub.s32 %s22, %s31
      %s74 = sor.u32 %s72, %s73
      %p75 = scmp.eq.s32.totalorder %s74, 0
      %s77 = sadd.s32 %s76, 1
      %s78 = scalar_select %p75, %s76, %s77
      %p81 = pneg %p75
      %p82 = scmp.eq.s32.totalorder %s13, 3
      %p83 = por %p81, %p82
      %p84 = scmp.ne.s32.totalorder %s76, %s79
      %p85 = scmp.eq.s32.totalorder %s13, 0
      %p86 = por %p84, %p85
      %p87 = scmp.ne.s32.totalorder %s76, %s79
      %p88 = scmp.eq.s32.totalorder %s18, 3
      %p89 = por %p87, %p88
      %p90 = scmp.ne.s32.totalorder %s79, %s80
      %p91 = scmp.eq.s32.totalorder %s18, 0
      %p92 = por %p90, %p91
      %p93 = scmp.ne.s32.totalorder %s79, %s80
      %p94 = scmp.eq.s32.totalorder %s19, 3
      %p95 = por %p93, %p94
      %p97 = scmp.ne.s32.totalorder %s80, %s96
      %p98 = scmp.eq.s32.totalorder %s19, 0
      %p99 = por %p97, %p98
      %p100 = scmp.le.s32.totalorder 1, %s13
      %p101 = scmp.lt.s32.totalorder %s13, 5
      %p102 = pnand %p100, %p101
      %p103 = pneg %p102
      // Predicated region
      $region9: #{tpu_custom_call.1} parent=5 // pred_check
        _
      $region10: #{tpu_custom_call.1} parent=5 // pred_check_branch
        %105 = sbr.rel (%p102) target = $region12
      $region11: #{tpu_custom_call.1} parent=5 // pred_region
        %s106 = ssub.s32 %s13, 1
      $region12: #{tpu_custom_call.1} parent=5 // pred_fallthru
        _
      %p107 = scmp.lt.s32.totalorder %s13, 4
      // Predicated region
      $region13: #{tpu_custom_call.1} parent=5 // pred_check
        %p108 = pneg %p107
      $region14: #{tpu_custom_call.1} parent=5 // pred_check_branch
        %110 = sbr.rel (%p108) target = $region16
      $region15: #{tpu_custom_call.1} parent=5 // pred_region
        // Predicated region
        $region17: #{tpu_custom_call.1} parent=15 // pred_check
          %p111 = pneg %p56
        $region18: #{tpu_custom_call.1} parent=15 // pred_check_branch
          %113 = sbr.rel (%p111) target = $region20
        $region19: #{tpu_custom_call.1} parent=15 // pred_region
          %s114 = sand.u32 %s46, 1
          %s115 = scalar_lea.sflag [#allocation3], %s114
          %s116 = sand.u32 %s46, 1
          %s117 = smul.addr %s116, 4
          %s118 = scalar_lea.vmem [#allocation2], %s117
          %120 = vsyncadd %s115, 0
          %s121 = smul.addr %s21, 2
          %s122 = sadd.s32 %s22, %s121
          %s123 = smul.addr %s20, 4
          %s124 = sadd.s32 %s122, %s123
          %s125 = smul.addr %s124, 2
          %s126 = scalar_lea.hbm %s0, %s125
          %s127 = sshll.u32 %s126, 4
          %s128 = int_to_ptr.hbm [resolvable:$true] %s127
          %s129 = sshll.u32 %s118, 4
          %s130 = int_to_ptr.vmem [resolvable:$true] %s129
          %135 = dma.hbm_to_vmem [thread:$0]  %s128, 64, %s130, %s115, 32, 32, 2
        $region20: #{tpu_custom_call.1} parent=15 // pred_fallthru
          _
      $region16: #{tpu_custom_call.1} parent=5 // pred_fallthru
        _
      %p136 = scmp.le.s32.totalorder 1, %s13
      %p137 = scmp.lt.s32.totalorder %s13, 5
      %p138 = pnand %p136, %p137
      %p139 = pneg %p138
      // Predicated region
      $region21: #{tpu_custom_call.1} parent=5 // pred_check
        _
      $region22: #{tpu_custom_call.1} parent=5 // pred_check_branch
        %141 = sbr.rel (%p138) target = $region24
      $region23: #{tpu_custom_call.1} parent=5 // pred_region
        %s142 = ssub.s32 %s13, 1
        %s143 = sand.u32 %s49, 1
        %s144 = scalar_lea.sflag [#allocation3], %s143
        %s145 = sand.u32 %s49, 1
        %s146 = smul.addr %s145, 4
        %s147 = scalar_lea.vmem [#allocation2], %s146
        // Predicated region
        $region25: #{tpu_custom_call.1} parent=23 // pred_check
          %p148 = pneg %p62
        $region26: #{tpu_custom_call.1} parent=23 // pred_check_branch
          %150 = sbr.rel (%p148) target = $region28
        $region27: #{tpu_custom_call.1} parent=23 // pred_region
          %152 = dma.done %s144, 64
        $region28: #{tpu_custom_call.1} parent=23 // pred_fallthru
          _
        %s153 = sand.u32 %s49, 1
        %s154 = scalar_lea.sflag [#allocation3], %s153
        %s155 = sand.u32 %s49, 1
        %s156 = smul.addr %s155, 4
        %s157 = scalar_lea.vmem [#allocation2], %s156
        %p158 = pneg %p62
        %p159 = pneg %p59
        %p160 = pneg %p92
        %p161 = pneg %p89
        %s162 = sand.u32 %s79, 1
        %s163 = scalar_lea.sflag [#allocation4], %s162
        %s164 = sand.u32 %s79, 1
        %s165 = smul.addr %s164, 4
        %s166 = scalar_lea.vmem [#allocation5], %s165
        %v167 = vld [vmem:[%s147] sm:$0x3]
        %v168 = vld [vmem:[%s147 + $0x2] sm:$0x3]
        %169 = vst [vmem:[%s166] sm:$0x3] %v167
        %170 = vst [vmem:[%s166 + $0x2] sm:$0x3] %v168
        %s171 = sand.u32 %s79, 1
        %s172 = scalar_lea.sflag [#allocation4], %s171
        %s173 = sand.u32 %s79, 1
        %s174 = smul.addr %s173, 4
        %s175 = scalar_lea.vmem [#allocation5], %s174
        // Predicated region
        $region29: #{tpu_custom_call.1} parent=23 // pred_check
          %p176 = pneg %p89
        $region30: #{tpu_custom_call.1} parent=23 // pred_check_branch
          %178 = sbr.rel (%p176) target = $region32
        $region31: #{tpu_custom_call.1} parent=23 // pred_region
          %180 = vsyncadd %s172, 0
          %s181 = sadd.s32 %s25, %s24
          %s182 = smul.addr %s23, 4
          %s183 = sadd.s32 %s181, %s182
          %s184 = smul.addr %s183, 2
          %s185 = scalar_lea.hbm %s1, %s184
          %s186 = sshll.u32 %s175, 4
          %s187 = int_to_ptr.vmem [resolvable:$true] %s186
          %s188 = sshll.u32 %s185, 4
          %s189 = int_to_ptr.hbm [resolvable:$true] %s188
          %194 = dma.vmem_to_hbm [thread:$0]  %s187, 64, %s189, %s172, 32, 64, 2
        $region32: #{tpu_custom_call.1} parent=23 // pred_fallthru
          _
      $region24: #{tpu_custom_call.1} parent=5 // pred_fallthru
        _
      %p195 = scmp.le.s32.totalorder 2, %s13
      // Predicated region
      $region33: #{tpu_custom_call.1} parent=5 // pred_check
        %p196 = pneg %p195
      $region34: #{tpu_custom_call.1} parent=5 // pred_check_branch
        %198 = sbr.rel (%p196) target = $region36
      $region35: #{tpu_custom_call.1} parent=5 // pred_region
        %s199 = ssub.s32 %s13, 2
        // Predicated region
        $region37: #{tpu_custom_call.1} parent=35 // pred_check
          %p200 = pneg %p95
        $region38: #{tpu_custom_call.1} parent=35 // pred_check_branch
          %202 = sbr.rel (%p200) target = $region40
        $region39: #{tpu_custom_call.1} parent=35 // pred_region
          %s203 = sand.u32 %s80, 1
          %s204 = scalar_lea.sflag [#allocation4], %s203
          %s205 = sand.u32 %s80, 1
          %s206 = smul.addr %s205, 4
          %s207 = scalar_lea.vmem [#allocation5], %s206
          %209 = dma.done %s204, 64
        $region40: #{tpu_custom_call.1} parent=35 // pred_fallthru
          _
      $region36: #{tpu_custom_call.1} parent=5 // pred_fallthru
        _
    $region6: #{tpu_custom_call.1} parent=1 // loop_footer
      %s17 = sadd.s32 1, %s13
    $region7: #{tpu_custom_call.1} parent=1 // loop_footer_branch
      %12 = sbr.rel target = $region3
    $region8: #{tpu_custom_call.1} parent=1 // loop_exit
      _
    %210 = vsyncpa [#allocation3], 1
    %s211 = scalar_lea.sflag [#allocation3], 1
    %212 = vsyncpa %s211, 1
    %213 = vsyncpa [#allocation4], 1
    %s214 = scalar_lea.sflag [#allocation4], 1
    %215 = vsyncpa %s214, 1

</llo_original>
